<compile_context>
chip_gen: v7x
topology: tpu7x:2x2x1
jax: 0.10.0
libtpu: 0.0.40
codegen_flags: <defaults>
</compile_context>

<pallas_src>
import jax
import jax.numpy as jnp
from jax.experimental import pallas as pl
from jax.experimental.pallas import tpu as pltpu


# ----------------------------------------------------------------------------
# Pallas kernel: one (Cout, 9*Cin) x (9*Cin, Mb) matmul + bias + ReLU per step.
# ----------------------------------------------------------------------------
def conv_matmul_kernel(p_ref, w_ref, b_ref, o_ref):
    # p_ref: (K, Mb)    im2col patches, K = 9*Cin, Mb = block of N*H*W (multiple of 128)
    # w_ref: (Cout, K)  pre-folded weights (resident)
    # b_ref: (Cout, 1)  bias (broadcast along lanes)
    # o_ref: (Cout, Mb) lane-dense output block
    acc = jnp.dot(w_ref[...], p_ref[...], preferred_element_type=jnp.float32)
    acc = acc + b_ref[...]
    o_ref[...] = jnp.maximum(acc, 0.0).astype(o_ref.dtype)


def conv_matmul_pallas(patches, w_t, b_col, *, num_blocks=None):
    """patches: (K, M), w_t: (Cout, K), b_col: (Cout, 1) -> (Cout, M)."""
    K, M = patches.shape
    Cout = w_t.shape[0]
    if num_blocks is None:
        # >= 2 parallel grid steps so both v7x TensorCores get work; falls back to 1.
        num_blocks = 2 if (M % 2 == 0 and (M // 2) % 128 == 0) else 1
    Mb = M // num_blocks
    return pl.pallas_call(
        conv_matmul_kernel,
        out_shape=jax.ShapeDtypeStruct((Cout, M), patches.dtype),
        grid=(num_blocks,),
        in_specs=[
            pl.BlockSpec((K, Mb), lambda i: (0, i)),       # patches block (lane-dense)
            pl.BlockSpec((Cout, K), lambda i: (0, 0)),     # resident folded weights
            pl.BlockSpec((Cout, 1), lambda i: (0, 0)),     # resident bias
        ],
        out_specs=pl.BlockSpec((Cout, Mb), lambda i: (0, i)),
        compiler_params=pltpu.CompilerParams(
            dimension_semantics=("parallel",)),
    )(patches, w_t, b_col)


# ----------------------------------------------------------------------------
# im2col (XLA glue): NCHW input -> (9*Cin, N*H*W) with K index = (dy*3+dx)*Cin + c,
# matching w.reshape(9*Cin, Cout) for HWIO weights.
# ----------------------------------------------------------------------------
def im2col_kmajor(x_nchw):
    N, C, H, W = x_nchw.shape
    xp = jnp.pad(x_nchw, ((0, 0), (0, 0), (1, 1), (1, 1)))
    xpt = jnp.transpose(xp, (1, 0, 2, 3))                      # (C, N, H+2, W+2)
    slabs = [xpt[:, :, dy:dy + H, dx:dx + W]                   # each (C, N, H, W)
             for dy in range(3) for dx in range(3)]
    patches = jnp.concatenate(slabs, axis=0)                   # (9C, N, H, W)
    return patches.reshape(9 * C, N * H * W)


def conv3x3_relu_nchw_pallas(x_nchw, w, b):
    """Standalone conv block: x (N,C,H,W), w (3,3,Cin,Cout), b (1,Cout) -> (N,Cout,H,W)."""
    N, C, H, W = x_nchw.shape
    Cout = w.shape[-1]
    patches = im2col_kmajor(x_nchw)
    w_t = jnp.transpose(w.reshape(9 * C, Cout))                # (Cout, 9C)
    out_cm = conv_matmul_pallas(patches, w_t, b.reshape(Cout, 1))
    return jnp.transpose(out_cm.reshape(Cout, N, H, W), (1, 0, 2, 3))


# ----------------------------------------------------------------------------
# Group transform glue (matches torch.rot90 / torchvision hflip,vflip on NCHW).
# ----------------------------------------------------------------------------
def _hflip(x):
    return jnp.flip(x, axis=-1)


def _vflip(x):
    return jnp.flip(x, axis=-2)


def group_transformed_input(x, symmetry_group):
    # x: (B, C, H, W) -> (G, B, C, H, W)
    if symmetry_group == 'id':
        return jnp.stack([x])
    elif symmetry_group == 'rot90':
        return jnp.stack([jnp.rot90(x, k=i, axes=(-2, -1)) for i in range(4)])
    elif symmetry_group == 'hflip':
        return jnp.stack([x, _hflip(x)])
    elif symmetry_group == 'vflip':
        return jnp.stack([x, _vflip(x)])
    elif symmetry_group in ('rot90_hflip', 'rot90_vflip'):
        flip = _hflip if symmetry_group == 'rot90_hflip' else _vflip
        base = [x, flip(x)]
        outs = []
        for i in range(2):
            for j in range(4):
                outs.append(jnp.rot90(base[i], k=j, axes=(-2, -1)))
        return jnp.stack(outs)
    else:
        raise NotImplementedError(symmetry_group)


def inverse_group_transformed_hidden_output(x_list, symmetry_group):
    # x_list: (G, B, C, H, W) -> (G, B, C, H, W)   (used by the pure-JAX reference)
    if symmetry_group == 'id':
        return x_list
    elif symmetry_group == 'rot90':
        return jnp.stack(
            [jnp.rot90(x_list[i], k=4 - i, axes=(-2, -1)) for i in range(4)])
    elif symmetry_group == 'hflip':
        return jnp.stack([x_list[0], _hflip(x_list[1])])
    elif symmetry_group == 'vflip':
        return jnp.stack([x_list[0], _vflip(x_list[1])])
    elif symmetry_group in ('rot90_hflip', 'rot90_vflip'):
        flip = _hflip if symmetry_group == 'rot90_hflip' else _vflip
        outs = []
        for i in range(8):
            y = jnp.rot90(x_list[i], k=4 - i % 4, axes=(-2, -1))
            if i > 3:
                y = flip(y)
            outs.append(y)
        return jnp.stack(outs)
    else:
        raise NotImplementedError(symmetry_group)


def inverse_mean_channel_major(y, symmetry_group):
    # y: (Cout, G, B, H, W) with the group orbit on axis 1.
    # Returns mean over the inverse-transformed group: (Cout, B, H, W).
    if symmetry_group == 'id':
        parts = [y[:, 0]]
    elif symmetry_group == 'rot90':
        parts = [jnp.rot90(y[:, i], k=4 - i, axes=(-2, -1)) for i in range(4)]
    elif symmetry_group == 'hflip':
        parts = [y[:, 0], _hflip(y[:, 1])]
    elif symmetry_group == 'vflip':
        parts = [y[:, 0], _vflip(y[:, 1])]
    elif symmetry_group in ('rot90_hflip', 'rot90_vflip'):
        flip = _hflip if symmetry_group == 'rot90_hflip' else _vflip
        parts = []
        for i in range(8):
            t = jnp.rot90(y[:, i], k=4 - i % 4, axes=(-2, -1))
            if i > 3:
                t = flip(t)
            parts.append(t)
    else:
        raise NotImplementedError(symmetry_group)
    acc = parts[0]
    for p in parts[1:]:
        acc = acc + p
    return acc / float(len(parts))


# ----------------------------------------------------------------------------
# MultiEquiOperator.forward (operator_type='conv_block')
# ----------------------------------------------------------------------------
def multi_equi_operator_forward(x, w, b,
                                list_symmetry_groups=('rot90', 'hflip')):
    """x: (B, k, C, H, W); w: (3,3,C,Cout); b: (1,Cout) -> (B, k, Cout, H, W)."""
    B, k, C, H, W = x.shape
    Cout = w.shape[-1]

    # 1. per-slot group orbits, concatenated on the group axis (XLA glue; tiny tensors)
    parts, group_sizes = [], []
    for i in range(k):
        t = group_transformed_input(x[:, i], list_symmetry_groups[i])  # (G_i, B, C, H, W)
        group_sizes.append(t.shape[0])
        parts.append(t)
    x_group = jnp.concatenate(parts, axis=0)                 # (G_tot, B, C, H, W)
    G_tot = x_group.shape[0]
    N = G_tot * B
    x_flat = x_group.reshape(N, C, H, W)

    # 2. operator (conv block) = one fused lane-dense Pallas matmul over the whole batch
    patches = im2col_kmajor(x_flat)                          # (9C, N*H*W)
    w_t = jnp.transpose(w.reshape(9 * C, Cout))              # (Cout, 9C)
    out_cm = conv_matmul_pallas(patches, w_t, b.reshape(Cout, 1))  # (Cout, N*H*W)
    out = out_cm.reshape(Cout, G_tot, B, H, W)

    # 3. inverse transforms + group mean, channel-major (no big post-kernel transpose)
    slots, off = [], 0
    for i in range(k):
        g = group_sizes[i]
        slots.append(inverse_mean_channel_major(out[:, off:off + g],
                                                list_symmetry_groups[i]))
        off += g
    out_km = jnp.stack(slots, axis=0)                        # (k, Cout, B, H, W)
    return jnp.transpose(out_km, (2, 0, 1, 3, 4))            # (B, k, Cout, H, W)


# ----------------------------------------------------------------------------
# Pure-JAX references (correctness checks).
# ----------------------------------------------------------------------------
def conv3x3_relu_nchw_ref(x, w, b):
    y = jax.lax.conv_general_dilated(
        x, w, window_strides=(1, 1), padding='SAME',
        dimension_numbers=('NCHW', 'HWIO', 'NCHW'))
    return jnp.maximum(y + b.reshape(1, -1, 1, 1), 0.0)


def multi_equi_operator_ref(x, w, b, list_symmetry_groups=('rot90', 'hflip')):
    B, k, C, H, W = x.shape
    outs = []
    for i in range(k):
        t = group_transformed_input(x[:, i], list_symmetry_groups[i])  # (G, B, C, H, W)
        G = t.shape[0]
        y = conv3x3_relu_nchw_ref(t.reshape(G * B, C, H, W), w, b)
        y = y.reshape(G, B, -1, H, W)
        inv = inverse_group_transformed_hidden_output(y, list_symmetry_groups[i])
        outs.append(jnp.mean(inv, axis=0))
    return jnp.stack(outs, axis=1)


if __name__ == "__main__":
    key = jax.random.PRNGKey(0)
    B, k, C, H, W = 2, 2, 4, 16, 16
    Cout = 8

    kx, kw, kb = jax.random.split(key, 3)
    x = jax.random.normal(kx, (B, k, C, H, W), dtype=jnp.float32)
    # deterministic "conv block" params: Conv2d(C, Cout, 3, padding=1) + ReLU
    w = jax.random.normal(kw, (3, 3, C, Cout), dtype=jnp.float32) * 0.1
    b = jax.random.normal(kb, (1, Cout), dtype=jnp.float32) * 0.1

    fwd = jax.jit(multi_equi_operator_forward)
    out = jax.block_until_ready(fwd(x, w, b))
    assert out.shape == (B, k, Cout, H, W), out.shape

    # Full-pipeline check against a pure-JAX (lax.conv) reference.
    ref = multi_equi_operator_ref(x, w, b)
    if not jnp.allclose(out, ref, atol=1e-4, rtol=1e-4):
        raise AssertionError("Pallas MultiEquiOperator mismatch vs reference")

    # Standalone check of the Pallas conv hot path.
    xt = jax.random.normal(jax.random.PRNGKey(1), (4, C, H, W), dtype=jnp.float32)
    got = jax.block_until_ready(jax.jit(conv3x3_relu_nchw_pallas)(xt, w, b))
    want = conv3x3_relu_nchw_ref(xt, w, b)
    if not jnp.allclose(got, want, atol=1e-4, rtol=1e-4):
        raise AssertionError("Pallas conv mismatch vs reference")

    print("KERNEL_OK")
</pallas_src>

<mosaic_0001>
module attributes {stable_mosaic.version = 11 : i64} {
  func.func @conv_matmul_kernel(%arg0: i32, %arg1: memref<36x1536xf32, #tpu.memory_space<vmem>>, %arg2: memref<8x36xf32, #tpu.memory_space<vmem>>, %arg3: memref<8x1xf32, #tpu.memory_space<vmem>>, %arg4: memref<8x1536xf32, #tpu.memory_space<vmem>>) attributes {dimension_semantics = [#tpu.dimension_semantics<parallel>], iteration_bounds = array<i64: 2>, scalar_prefetch = 0 : i64, scratch_operands = 0 : i64, tpu.core_type = #tpu.core_type<tc>, window_params = [{transform_indices = @transform_0, window_bounds = array<i64: 36, 1536>}, {pipeline_mode = #tpu.pipeline_mode<synchronous>, transform_indices = @transform_1, window_bounds = array<i64: 8, 36>}, {pipeline_mode = #tpu.pipeline_mode<synchronous>, transform_indices = @transform_2, window_bounds = array<i64: 8, 1>}, {transform_indices = @transform_3, window_bounds = array<i64: 8, 1536>}]} {
    %c0 = arith.constant 0 : index
    %c0_0 = arith.constant 0 : index
    %0 = vector.load %arg2[%c0, %c0_0] : memref<8x36xf32, #tpu.memory_space<vmem>>, vector<8x36xf32>
    %c0_1 = arith.constant 0 : index
    %c0_2 = arith.constant 0 : index
    %1 = vector.load %arg1[%c0_1, %c0_2] : memref<36x1536xf32, #tpu.memory_space<vmem>>, vector<36x1536xf32>
    %cst = arith.constant dense<0.000000e+00> : vector<8x1536xf32>
    %2 = tpu.matmul %0, %1, %cst {dimension_numbers = #tpu.dot_dimension_numbers<[1], [0], [0], [1], [0, 0, 1, 1], [], []>} : vector<8x36xf32>, vector<36x1536xf32>, vector<8x1536xf32> -> vector<8x1536xf32>
    %c0_3 = arith.constant 0 : index
    %c0_4 = arith.constant 0 : index
    %3 = vector.load %arg3[%c0_3, %c0_4] : memref<8x1xf32, #tpu.memory_space<vmem>>, vector<8x1xf32>
    %4 = vector.broadcast %3 : vector<8x1xf32> to vector<8x1536xf32>
    %5 = arith.addf %2, %4 : vector<8x1536xf32>
    %cst_5 = arith.constant 0.000000e+00 : f32
    %6 = vector.broadcast %cst_5 : f32 to vector<8x1536xf32>
    %7 = arith.maximumf %5, %6 : vector<8x1536xf32>
    %c0_6 = arith.constant 0 : index
    %c0_7 = arith.constant 0 : index
    %8 = vector.load %arg4[%c0_6, %c0_7] : memref<8x1536xf32, #tpu.memory_space<vmem>>, vector<8x1536xf32>
    tpu.vector_store %arg4[%c0_6, %c0_7], %7 {strides = array<i32>} : memref<8x1536xf32, #tpu.memory_space<vmem>>, vector<8x1536xf32>,
    return
  }
  func.func @transform_0(%arg0: i32) -> (i32, i32) {
    %c0_i32 = arith.constant 0 : i32
    %c0_i32_0 = arith.constant 0 : i32
    return %c0_i32, %arg0 : i32, i32
  }
  func.func @transform_1(%arg0: i32) -> (i32, i32) {
    %c0_i32 = arith.constant 0 : i32
    %c0_i32_0 = arith.constant 0 : i32
    %c0_i32_1 = arith.constant 0 : i32
    return %c0_i32, %c0_i32_0 : i32, i32
  }
  func.func @transform_2(%arg0: i32) -> (i32, i32) {
    %c0_i32 = arith.constant 0 : i32
    %c0_i32_0 = arith.constant 0 : i32
    %c0_i32_1 = arith.constant 0 : i32
    return %c0_i32, %c0_i32_0 : i32, i32
  }
  func.func @transform_3(%arg0: i32) -> (i32, i32) {
    %c0_i32 = arith.constant 0 : i32
    %c0_i32_0 = arith.constant 0 : i32
    return %c0_i32, %arg0 : i32, i32
  }
}

</mosaic_0001>

<llo_original>
// kernel: multi_equi_operator_forward.1
$region0: #{multi_equi_operator_forward.1}
  #allocation0 [shape = 'u32[]', space=smem, size = 0x4, offset = 0x4, fixed_abs, tag = 'smem constant byte address 0x4 - core index']
  #allocation1 [shape = 'u32[144,128]{1,0:T(1,128)}', space=vmem, size = 0x12000, scoped, tag = 'internal scratch']
  %s0 = inlined_call_operand.vmem [shape: f32[36,3072], index: 0, kind: input, shape index: {}]
  %s1 = inlined_call_operand.vmem [shape: f32[8,36], index: 1, kind: input, shape index: {}]
  %s2 = inlined_call_operand.vmem [shape: f32[8,1], index: 2, kind: input, shape index: {}]
  %s3 = inlined_call_operand.vmem [shape: f32[8,3072], index: 3, kind: output, shape index: {}]
  %s4 = sld [smem:[#allocation0]]
  $region68: #{multi_equi_operator_forward.1} parent=0
    _
  %s6 = ssub.s32 1, %s4
  %s7 = scalar_select 0, %s6, %s4
  $region1: #{multi_equi_operator_forward.1} parent=0
    #allocation2 [shape = 'u8[491520]{0}', space=vmem, size = 0x78000, scoped, tag = 'input window, operand 0']
    loop: start=0, step=1, limit=4
    $region2: #{multi_equi_operator_forward.1} parent=1 // loop_pre_header
      _
    $region3: #{multi_equi_operator_forward.1} parent=1 // loop_header
      %s9 = sphi 0, %s13
      %p10 = scmp.ge.s32.totalorder %s9, 4
      %s19 = sphi 0, %s21
      %s22 = sphi 0, %s19
      %s23 = sphi 0, %s22
      %s39 = sphi 0, %s23
      %s43 = sphi 0, %s43
      %s45 = sphi 0, %s43
      %s46 = sphi 0, %s45
      %s60 = sphi 0, %s46
      %s64 = sphi 0, %s64
      %s66 = sphi 0, %s64
      %s67 = sphi 0, %s66
      %s81 = sphi 0, %s67
      %s87 = sphi 0, %s89
      %s90 = sphi 0, %s87
      %s91 = sphi 0, %s90
      %s107 = sphi 0, %s91
    $region4: #{multi_equi_operator_forward.1} parent=1 // loop_header_branch
      %12 = sbr.rel (%p10) target = $region8
    $region5: #{multi_equi_operator_forward.1} parent=1 // loop_body
      %s14 = ssub.s32 %s9, 1
      %s15 = ssub.s32 %s9, 2
      %s16 = sadd.s32 %s9, 1
      %s17 = ssub.s32 %s9, %s16
      %p18 = scmp.eq.s32.totalorder %s17, 0
      %s20 = sadd.s32 %s19, 1
      %s21 = scalar_select %p18, %s19, %s20
      %p24 = pneg %p18
      %p25 = scmp.eq.s32.totalorder %s9, 1
      %p26 = por %p24, %p25
      %p27 = scmp.ne.s32.totalorder %s19, %s22
      %p28 = scmp.eq.s32.totalorder %s9, 0
      %p29 = por %p27, %p28
      %p30 = scmp.ne.s32.totalorder %s19, %s22
      %p31 = scmp.eq.s32.totalorder %s14, 1
      %p32 = por %p30, %p31
      %p33 = scmp.ne.s32.totalorder %s22, %s23
      %p34 = scmp.eq.s32.totalorder %s14, 0
      %p35 = por %p33, %p34
      %p36 = scmp.ne.s32.totalorder %s22, %s23
      %p37 = scmp.eq.s32.totalorder %s15, 1
      %p38 = por %p36, %p37
      %p40 = scmp.ne.s32.totalorder %s23, %s39
      %p41 = scmp.eq.s32.totalorder %s15, 0
      %p42 = por %p40, %p41
      %s44 = sadd.s32 %s43, 1
      %p47 = scmp.eq.s32.totalorder %s9, 1
      %p48 = scmp.ne.s32.totalorder %s43, %s45
      %p49 = scmp.eq.s32.totalorder %s9, 0
      %p50 = por %p48, %p49
      %p51 = scmp.ne.s32.totalorder %s43, %s45
      %p52 = scmp.eq.s32.totalorder %s14, 1
      %p53 = por %p51, %p52
      %p54 = scmp.ne.s32.totalorder %s45, %s46
      %p55 = scmp.eq.s32.totalorder %s14, 0
      %p56 = por %p54, %p55
      %p57 = scmp.ne.s32.totalorder %s45, %s46
      %p58 = scmp.eq.s32.totalorder %s15, 1
      %p59 = por %p57, %p58
      %p61 = scmp.ne.s32.totalorder %s46, %s60
      %p62 = scmp.eq.s32.totalorder %s15, 0
      %p63 = por %p61, %p62
      %s65 = sadd.s32 %s64, 1
      %p68 = scmp.eq.s32.totalorder %s9, 1
      %p69 = scmp.ne.s32.totalorder %s64, %s66
      %p70 = scmp.eq.s32.totalorder %s9, 0
      %p71 = por %p69, %p70
      %p72 = scmp.ne.s32.totalorder %s64, %s66
      %p73 = scmp.eq.s32.totalorder %s14, 1
      %p74 = por %p72, %p73
      %p75 = scmp.ne.s32.totalorder %s66, %s67
      %p76 = scmp.eq.s32.totalorder %s14, 0
      %p77 = por %p75, %p76
      %p78 = scmp.ne.s32.totalorder %s66, %s67
      %p79 = scmp.eq.s32.totalorder %s15, 1
      %p80 = por %p78, %p79
      %p82 = scmp.ne.s32.totalorder %s67, %s81
      %p83 = scmp.eq.s32.totalorder %s15, 0
      %p84 = por %p82, %p83
      %s85 = ssub.s32 %s9, %s16
      %p86 = scmp.eq.s32.totalorder %s85, 0
      %s88 = sadd.s32 %s87, 1
      %s89 = scalar_select %p86, %s87, %s88
      %p92 = pneg %p86
      %p93 = scmp.eq.s32.totalorder %s9, 1
      %p94 = por %p92, %p93
      %p95 = scmp.ne.s32.totalorder %s87, %s90
      %p96 = scmp.eq.s32.totalorder %s9, 0
      %p97 = por %p95, %p96
      %p98 = scmp.ne.s32.totalorder %s87, %s90
      %p99 = scmp.eq.s32.totalorder %s14, 1
      %p100 = por %p98, %p99
      %p101 = scmp.ne.s32.totalorder %s90, %s91
      %p102 = scmp.eq.s32.totalorder %s14, 0
      %p103 = por %p101, %p102
      %p104 = scmp.ne.s32.totalorder %s90, %s91
      %p105 = scmp.eq.s32.totalorder %s15, 1
      %p106 = por %p104, %p105
      %p108 = scmp.ne.s32.totalorder %s91, %s107
      %p109 = scmp.eq.s32.totalorder %s15, 0
      %p110 = por %p108, %p109
      %p111 = scmp.le.s32.totalorder 1, %s9
      %p112 = scmp.lt.s32.totalorder %s9, 3
      %p113 = pnand %p111, %p112
      %p114 = pneg %p113
      // Predicated region
      $region9: #{multi_equi_operator_forward.1} parent=5 // pred_check
        _
      $region10: #{multi_equi_operator_forward.1} parent=5 // pred_check_branch
        %116 = sbr.rel (%p113) target = $region12
      $region11: #{multi_equi_operator_forward.1} parent=5 // pred_region
        %s117 = ssub.s32 %s9, 1
        // Predicated region
        $region13: #{multi_equi_operator_forward.1} parent=11 // pred_check
          %p118 = pneg %p56
        $region14: #{multi_equi_operator_forward.1} parent=11 // pred_check_branch
          %120 = sbr.rel (%p118) target = $region16
        $region15: #{multi_equi_operator_forward.1} parent=11 // pred_region
          _
        $region16: #{multi_equi_operator_forward.1} parent=11 // pred_fallthru
          _
        // Predicated region
        $region17: #{multi_equi_operator_forward.1} parent=11 // pred_check
          %p121 = pneg %p77
        $region18: #{multi_equi_operator_forward.1} parent=11 // pred_check_branch
          %123 = sbr.rel (%p121) target = $region20
        $region19: #{multi_equi_operator_forward.1} parent=11 // pred_region
          _
        $region20: #{multi_equi_operator_forward.1} parent=11 // pred_fallthru
          _
      $region12: #{multi_equi_operator_forward.1} parent=5 // pred_fallthru
        _
      %p124 = scmp.lt.s32.totalorder %s9, 2
      // Predicated region
      $region21: #{multi_equi_operator_forward.1} parent=5 // pred_check
        %p125 = pneg %p124
      $region22: #{multi_equi_operator_forward.1} parent=5 // pred_check_branch
        %127 = sbr.rel (%p125) target = $region24
      $region23: #{multi_equi_operator_forward.1} parent=5 // pred_region
        // Predicated region
        $region25: #{multi_equi_operator_forward.1} parent=23 // pred_check
          %p128 = pneg %p29
        $region26: #{multi_equi_operator_forward.1} parent=23 // pred_check_branch
          %130 = sbr.rel (%p128) target = $region28
        $region27: #{multi_equi_operator_forward.1} parent=23 // pred_region
          %s131 = sand.u32 %s19, 1
          %s132 = sand.u32 %s19, 1
          %s133 = smul.addr %s132, 480
          %s134 = scalar_lea.vmem [#allocation2], %s133
          %s135 = smul.u32 12, %s9
          %s136 = smul.addr %s135, 8
          %s137 = scalar_lea.vmem %s0, %s136
          // Predicated region
          $region29: #{multi_equi_operator_forward.1} parent=27 // pred_check
            _
          $region30: #{multi_equi_operator_forward.1} parent=27 // pred_check_branch
            %139 = sbr.rel (0) target = $region32
          $region31: #{multi_equi_operator_forward.1} parent=27 // pred_region
            // Predicated region
            $region33: #{multi_equi_operator_forward.1} parent=31 // pred_check
              _
            $region34: #{multi_equi_operator_forward.1} parent=31 // pred_check_branch
              %141 = sbr.rel (0) target = $region36
            $region35: #{multi_equi_operator_forward.1} parent=31 // pred_region
              loop: start=0, step=1, limit=1
              $region37: #{multi_equi_operator_forward.1} parent=35 // loop_pre_header
                _
              $region38: #{multi_equi_operator_forward.1} parent=35 // loop_header
                %s143 = sphi 0, %s147
                %p144 = scmp.ge.s32.totalorder %s143, 1
                %s148 = sphi %s137, %s137
                %s149 = sphi %s134, %s134
              $region39: #{multi_equi_operator_forward.1} parent=35 // loop_header_branch
                %146 = sbr.rel (%p144) target = $region43
              $region40: #{multi_equi_operator_forward.1} parent=35 // loop_body
                %v150 = vld [vmem:[%s148] sm:$0xff]
                %151 = vst [vmem:[%s149] sm:$0xff] %v150
                %v152 = vld [vmem:[%s148 + $0x8] sm:$0xff]
                %153 = vst [vmem:[%s149 + $0x8] sm:$0xff] %v152
                %v154 = vld [vmem:[%s148 + $0x10] sm:$0xff]
                %155 = vst [vmem:[%s149 + $0x10] sm:$0xff] %v154
                %v156 = vld [vmem:[%s148 + $0x18] sm:$0xff]
                %157 = vst [vmem:[%s149 + $0x18] sm:$0xff] %v156
                %v158 = vld [vmem:[%s148 + $0x20] sm:$0xff]
                %159 = vst [vmem:[%s149 + $0x20] sm:$0xff] %v158
                %v160 = vld [vmem:[%s148 + $0x28] sm:$0xff]
                %161 = vst [vmem:[%s149 + $0x28] sm:$0xff] %v160
                %v162 = vld [vmem:[%s148 + $0x30] sm:$0xff]
                %163 = vst [vmem:[%s149 + $0x30] sm:$0xff] %v162
                %v164 = vld [vmem:[%s148 + $0x38] sm:$0xff]
                %165 = vst [vmem:[%s149 + $0x38] sm:$0xff] %v164
                %v166 = vld [vmem:[%s148 + $0x40] sm:$0xff]
                %167 = vst [vmem:[%s149 + $0x40] sm:$0xff] %v166
                %v168 = vld [vmem:[%s148 + $0x48] sm:$0xff]
                %169 = vst [vmem:[%s149 + $0x48] sm:$0xff] %v168
                %v170 = vld [vmem:[%s148 + $0x50] sm:$0xff]
                %171 = vst [vmem:[%s149 + $0x50] sm:$0xff] %v170
                %v172 = vld [vmem:[%s148 + $0x58] sm:$0xff]
                %173 = vst [vmem:[%s149 + $0x58] sm:$0xff] %v172
                %v174 = vld [vmem:[%s148 + $0xc0] sm:$0xff]
                %175 = vst [vmem:[%s149 + $0x60] sm:$0xff] %v174
                %v176 = vld [vmem:[%s148 + $0xc8] sm:$0xff]
                %177 = vst [vmem:[%s149 + $0x68] sm:$0xff] %v176
                %v178 = vld [vmem:[%s148 + $0xd0] sm:$0xff]
                %179 = vst [vmem:[%s149 + $0x70] sm:$0xff] %v178
                %v180 = vld [vmem:[%s148 + $0xd8] sm:$0xff]
                %181 = vst [vmem:[%s149 + $0x78] sm:$0xff] %v180
                %v182 = vld [vmem:[%s148 + $0xe0] sm:$0xff]
                %183 = vst [vmem:[%s149 + $0x80] sm:$0xff] %v182
                %v184 = vld [vmem:[%s148 + $0xe8] sm:$0xff]
                %185 = vst [vmem:[%s149 + $0x88] sm:$0xff] %v184
                %v186 = vld [vmem:[%s148 + $0xf0] sm:$0xff]
                %187 = vst [vmem:[%s149 + $0x90] sm:$0xff] %v186
                %v188 = vld [vmem:[%s148 + $0xf8] sm:$0xff]
                %189 = vst [vmem:[%s149 + $0x98] sm:$0xff] %v188
                %v190 = vld [vmem:[%s148 + $0x100] sm:$0xff]
                %191 = vst [vmem:[%s149 + $0xa0] sm:$0xff] %v190
                %v192 = vld [vmem:[%s148 + $0x108] sm:$0xff]
                %193 = vst [vmem:[%s149 + $0xa8] sm:$0xff] %v192
                %v194 = vld [vmem:[%s148 + $0x110] sm:$0xff]
                %195 = vst [vmem:[%s149 + $0xb0] sm:$0xff] %v194
                %v196 = vld [vmem:[%s148 + $0x118] sm:$0xff]
                %197 = vst [vmem:[%s149 + $0xb8] sm:$0xff] %v196
                %v198 = vld [vmem:[%s148 + $0x180] sm:$0xff]
                %199 = vst [vmem:[%s149 + $0xc0] sm:$0xff] %v198
                %v200 = vld [vmem:[%s148 + $0x188] sm:$0xff]
                %201 = vst [vmem:[%s149 + $0xc8] sm:$0xff] %v200
                %v202 = vld [vmem:[%s148 + $0x190] sm:$0xff]
                %203 = vst [vmem:[%s149 + $0xd0] sm:$0xff] %v202
                %v204 = vld [vmem:[%s148 + $0x198] sm:$0xff]
                %205 = vst [vmem:[%s149 + $0xd8] sm:$0xff] %v204
                %v206 = vld [vmem:[%s148 + $0x1a0] sm:$0xff]
                %207 = vst [vmem:[%s149 + $0xe0] sm:$0xff] %v206
                %v208 = vld [vmem:[%s148 + $0x1a8] sm:$0xff]
                %209 = vst [vmem:[%s149 + $0xe8] sm:$0xff] %v208
                %v210 = vld [vmem:[%s148 + $0x1b0] sm:$0xff]
                %211 = vst [vmem:[%s149 + $0xf0] sm:$0xff] %v210
                %v212 = vld [vmem:[%s148 + $0x1b8] sm:$0xff]
                %213 = vst [vmem:[%s149 + $0xf8] sm:$0xff] %v212
                %v214 = vld [vmem:[%s148 + $0x1c0] sm:$0xff]
                %215 = vst [vmem:[%s149 + $0x100] sm:$0xff] %v214
                %v216 = vld [vmem:[%s148 + $0x1c8] sm:$0xff]
                %217 = vst [vmem:[%s149 + $0x108] sm:$0xff] %v216
                %v218 = vld [vmem:[%s148 + $0x1d0] sm:$0xff]
                %219 = vst [vmem:[%s149 + $0x110] sm:$0xff] %v218
                %v220 = vld [vmem:[%s148 + $0x1d8] sm:$0xff]
                %221 = vst [vmem:[%s149 + $0x118] sm:$0xff] %v220
                %v222 = vld [vmem:[%s148 + $0x240] sm:$0xff]
                %223 = vst [vmem:[%s149 + $0x120] sm:$0xff] %v222
                %v224 = vld [vmem:[%s148 + $0x248] sm:$0xff]
                %225 = vst [vmem:[%s149 + $0x128] sm:$0xff] %v224
                %v226 = vld [vmem:[%s148 + $0x250] sm:$0xff]
                %227 = vst [vmem:[%s149 + $0x130] sm:$0xff] %v226
                %v228 = vld [vmem:[%s148 + $0x258] sm:$0xff]
                %229 = vst [vmem:[%s149 + $0x138] sm:$0xff] %v228
                %v230 = vld [vmem:[%s148 + $0x260] sm:$0xff]
                %231 = vst [vmem:[%s149 + $0x140] sm:$0xff] %v230
                %v232 = vld [vmem:[%s148 + $0x268] sm:$0xff]
                %233 = vst [vmem:[%s149 + $0x148] sm:$0xff] %v232
                %v234 = vld [vmem:[%s148 + $0x270] sm:$0xff]
                %235 = vst [vmem:[%s149 + $0x150] sm:$0xff] %v234
                %v236 = vld [vmem:[%s148 + $0x278] sm:$0xff]
                %237 = vst [vmem:[%s149 + $0x158] sm:$0xff] %v236
                %v238 = vld [vmem:[%s148 + $0x280] sm:$0xff]
                %239 = vst [vmem:[%s149 + $0x160] sm:$0xff] %v238
                %v240 = vld [vmem:[%s148 + $0x288] sm:$0xff]
                %241 = vst [vmem:[%s149 + $0x168] sm:$0xff] %v240
                %v242 = vld [vmem:[%s148 + $0x290] sm:$0xff]
                %243 = vst [vmem:[%s149 + $0x170] sm:$0xff] %v242
                %v244 = vld [vmem:[%s148 + $0x298] sm:$0xff]
                %245 = vst [vmem:[%s149 + $0x178] sm:$0xff] %v244
                %v246 = vld [vmem:[%s148 + $0x300] sm:$0xff]
                %247 = vst [vmem:[%s149 + $0x180] sm:$0xff] %v246
                %v248 = vld [vmem:[%s148 + $0x308] sm:$0xff]
                %249 = vst [vmem:[%s149 + $0x188] sm:$0xff] %v248
                %v250 = vld [vmem:[%s148 + $0x310] sm:$0xff]
                %251 = vst [vmem:[%s149 + $0x190] sm:$0xff] %v250
                %v252 = vld [vmem:[%s148 + $0x318] sm:$0xff]
                %253 = vst [vmem:[%s149 + $0x198] sm:$0xff] %v252
                %v254 = vld [vmem:[%s148 + $0x320] sm:$0xff]
                %255 = vst [vmem:[%s149 + $0x1a0] sm:$0xff] %v254
                %v256 = vld [vmem:[%s148 + $0x328] sm:$0xff]
                %257 = vst [vmem:[%s149 + $0x1a8] sm:$0xff] %v256
                %v258 = vld [vmem:[%s148 + $0x330] sm:$0xff]
                %259 = vst [vmem:[%s149 + $0x1b0] sm:$0xff] %v258
                %v260 = vld [vmem:[%s148 + $0x338] sm:$0xff]
                %261 = vst [vmem:[%s149 + $0x1b8] sm:$0xff] %v260
                %v262 = vld [vmem:[%s148 + $0x340] sm:$0xff]
                %263 = vst [vmem:[%s149 + $0x1c0] sm:$0xff] %v262
                %v264 = vld [vmem:[%s148 + $0x348] sm:$0xff]
                %265 = vst [vmem:[%s149 + $0x1c8] sm:$0xff] %v264
                %v266 = vld [vmem:[%s148 + $0x350] sm:$0xff]
                %267 = vst [vmem:[%s149 + $0x1d0] sm:$0xff] %v266
                %v268 = vld [vmem:[%s148 + $0x358] sm:$0xff]
                %269 = vst [vmem:[%s149 + $0x1d8] sm:$0xff] %v268
              $region41: #{multi_equi_operator_forward.1} parent=35 // loop_footer
                %s147 = sadd.s32 1, %s143
              $region42: #{multi_equi_operator_forward.1} parent=35 // loop_footer_branch
                %142 = sbr.rel target = $region38
              $region43: #{multi_equi_operator_forward.1} parent=35 // loop_exit
                _
            $region36: #{multi_equi_operator_forward.1} parent=31 // pred_fallthru
              _
            // Predicated region
            $region44: #{multi_equi_operator_forward.1} parent=31 // pred_check
              _
            $region45: #{multi_equi_operator_forward.1} parent=31 // pred_check_branch
              %271 = sbr.rel target = $region47
            $region46: #{multi_equi_operator_forward.1} parent=31 // pred_region
              _
            $region47: #{multi_equi_operator_forward.1} parent=31 // pred_fallthru
              _
          $region32: #{multi_equi_operator_forward.1} parent=27 // pred_fallthru
            _
          %272 = vnop
        $region28: #{multi_equi_operator_forward.1} parent=23 // pred_fallthru
          _
      $region24: #{multi_equi_operator_forward.1} parent=5 // pred_fallthru
        _
      %p273 = scmp.le.s32.totalorder 1, %s9
      %p274 = scmp.lt.s32.totalorder %s9, 3
      %p275 = pnand %p273, %p274
      %p276 = pneg %p275
      // Predicated region
      $region48: #{multi_equi_operator_forward.1} parent=5 // pred_check
        _
      $region49: #{multi_equi_operator_forward.1} parent=5 // pred_check_branch
        %278 = sbr.rel (%p275) target = $region51
      $region50: #{multi_equi_operator_forward.1} parent=5 // pred_region
        %s279 = ssub.s32 %s9, 1
        %s280 = sand.u32 %s22, 1
        %s281 = sand.u32 %s22, 1
        %s282 = smul.addr %s281, 480
        %s283 = scalar_lea.vmem [#allocation2], %s282
        // Predicated region
        $region52: #{multi_equi_operator_forward.1} parent=50 // pred_check
          %p284 = pneg %p35
        $region53: #{multi_equi_operator_forward.1} parent=50 // pred_check_branch
          %286 = sbr.rel (%p284) target = $region55
        $region54: #{multi_equi_operator_forward.1} parent=50 // pred_region
          _
        $region55: #{multi_equi_operator_forward.1} parent=50 // pred_fallthru
          _
        %s287 = sand.u32 %s22, 1
        %s288 = sand.u32 %s22, 1
        %s289 = smul.addr %s288, 480
        %s290 = scalar_lea.vmem [#allocation2], %s289
        %p291 = pneg %p35
        %p292 = pneg %p32
        %p293 = pneg %p56
        %p294 = pneg %p53
        %p295 = pneg %p77
        %p296 = pneg %p74
        %p297 = pneg %p103
        %p298 = pneg %p100
        %s299 = smul.u32 12, %s14
        %p300 = scmp.lt.s32.totalorder %s299, 23
        %s301 = scalar_select %p300, %s299, 23
        %s302 = smul.addr %s301, 8
        %s303 = scalar_lea.vmem %s3, %s302
        %s304 = smul.u32 12, %s14
        %s305 = smul.u32 12, %s14
        %p306 = scmp.lt.s32.totalorder %s305, 23
        %s307 = scalar_select %p306, %s305, 23
        %s308 = smul.addr %s307, 8
        %s309 = scalar_lea.vmem %s3, %s308
        %s310 = smul.u32 12, %s14
        %v311 = vld [vmem:[%s1] sm:$0xff]
        %v312 = vld [vmem:[%s283] sm:$0xff]
        %v313 = vld [vmem:[%s283 + $0x8] sm:$0xff]
        %v314 = vld [vmem:[%s283 + $0x10] sm:$0xff]
        %v315 = vld [vmem:[%s283 + $0x18] sm:$0xff]
        %v316 = vld [vmem:[%s283 + $0x20] sm:$0xff]
        %v317 = vld [vmem:[%s283 + $0x28] sm:$0xff]
        %v318 = vld [vmem:[%s283 + $0x30] sm:$0xff]
        %v319 = vld [vmem:[%s283 + $0x38] sm:$0xff]
        %v320 = vld [vmem:[%s283 + $0x40] sm:$0xff]
        %v321 = vld [vmem:[%s283 + $0x48] sm:$0xff]
        %v322 = vld [vmem:[%s283 + $0x50] sm:$0xff]
        %v323 = vld [vmem:[%s283 + $0x58] sm:$0xff]
        %v324 = vld [vmem:[%s283 + $0x60] sm:$0xff]
        %v325 = vld [vmem:[%s283 + $0x68] sm:$0xff]
        %v326 = vld [vmem:[%s283 + $0x70] sm:$0xff]
        %v327 = vld [vmem:[%s283 + $0x78] sm:$0xff]
        %v328 = vld [vmem:[%s283 + $0x80] sm:$0xff]
        %v329 = vld [vmem:[%s283 + $0x88] sm:$0xff]
        %v330 = vld [vmem:[%s283 + $0x90] sm:$0xff]
        %v331 = vld [vmem:[%s283 + $0x98] sm:$0xff]
        %v332 = vld [vmem:[%s283 + $0xa0] sm:$0xff]
        %v333 = vld [vmem:[%s283 + $0xa8] sm:$0xff]
        %v334 = vld [vmem:[%s283 + $0xb0] sm:$0xff]
        %v335 = vld [vmem:[%s283 + $0xb8] sm:$0xff]
        %v336 = vld [vmem:[%s283 + $0xc0] sm:$0xff]
        %v337 = vld [vmem:[%s283 + $0xc8] sm:$0xff]
        %v338 = vld [vmem:[%s283 + $0xd0] sm:$0xff]
        %v339 = vld [vmem:[%s283 + $0xd8] sm:$0xff]
        %v340 = vld [vmem:[%s283 + $0xe0] sm:$0xff]
        %v341 = vld [vmem:[%s283 + $0xe8] sm:$0xff]
        %v342 = vld [vmem:[%s283 + $0xf0] sm:$0xff]
        %v343 = vld [vmem:[%s283 + $0xf8] sm:$0xff]
        %v344 = vld [vmem:[%s283 + $0x100] sm:$0xff]
        %v345 = vld [vmem:[%s283 + $0x108] sm:$0xff]
        %v346 = vld [vmem:[%s283 + $0x110] sm:$0xff]
        %v347 = vld [vmem:[%s283 + $0x118] sm:$0xff]
        %v348 = vld [vmem:[%s283 + $0x120] sm:$0xff]
        %v349 = vld [vmem:[%s283 + $0x128] sm:$0xff]
        %v350 = vld [vmem:[%s283 + $0x130] sm:$0xff]
        %v351 = vld [vmem:[%s283 + $0x138] sm:$0xff]
        %v352 = vld [vmem:[%s283 + $0x140] sm:$0xff]
        %v353 = vld [vmem:[%s283 + $0x148] sm:$0xff]
        %v354 = vld [vmem:[%s283 + $0x150] sm:$0xff]
        %v355 = vld [vmem:[%s283 + $0x158] sm:$0xff]
        %v356 = vld [vmem:[%s283 + $0x160] sm:$0xff]
        %v357 = vld [vmem:[%s283 + $0x168] sm:$0xff]
        %v358 = vld [vmem:[%s283 + $0x170] sm:$0xff]
        %v359 = vld [vmem:[%s283 + $0x178] sm:$0xff]
        %v360 = vld [vmem:[%s283 + $0x180] sm:$0xf]
        %v361 = vld [vmem:[%s283 + $0x188] sm:$0xf]
        %v362 = vld [vmem:[%s283 + $0x190] sm:$0xf]
        %v363 = vld [vmem:[%s283 + $0x198] sm:$0xf]
        %v364 = vld [vmem:[%s283 + $0x1a0] sm:$0xf]
        %v365 = vld [vmem:[%s283 + $0x1a8] sm:$0xf]
        %v366 = vld [vmem:[%s283 + $0x1b0] sm:$0xf]
        %v367 = vld [vmem:[%s283 + $0x1b8] sm:$0xf]
        %v368 = vld [vmem:[%s283 + $0x1c0] sm:$0xf]
        %v369 = vld [vmem:[%s283 + $0x1c8] sm:$0xf]
        %v370 = vld [vmem:[%s283 + $0x1d0] sm:$0xf]
        %v371 = vld [vmem:[%s283 + $0x1d8] sm:$0xf]
        %v372 = vld [vmem:[%s2] sm:$0xff]
        %374 = vset.pattern.permute.xlu0 0
        %375 = vperm.xlu0 %374, %v372
        %v376 = vpop.permute.xlu0 %375
        %vm378 = vcmask 293888
        %v380 = vsel %vm378, %v311, 0
        %vm382 = vcmask 1043456
        %v384 = vsel %vm382, %v360, 0
        %v387 = vsel %vm382, %v361, 0
        %v390 = vsel %vm382, %v362, 0
        %v393 = vsel %vm382, %v363, 0
        %v396 = vsel %vm382, %v364, 0
        %v399 = vsel %vm382, %v365, 0
        %v402 = vsel %vm382, %v366, 0
        %v405 = vsel %vm382, %v367, 0
        %v408 = vsel %vm382, %v368, 0
        %v411 = vsel %vm382, %v369, 0
        %v414 = vsel %vm382, %v370, 0
        %v417 = vsel %vm382, %v371, 0
        %419 = vmatprep.subr.mxu0 %v313
        %420 = vmatpush1.msra.mxu0 %v312
        %421 = vmatprep.subr.mxu0 %v325
        %422 = vmatpush1.msra.mxu0 %v324
        %423 = vmatprep.subr.mxu0 %v337
        %424 = vmatpush1.msra.mxu0 %v336
        %425 = vmatprep.subr.mxu0 %v349
        %426 = vmatpush1.msra.mxu0 %v348
        %427 = vmatprep.subr.mxu0 %v387
        %428 = vmatpush1.msra.mxu0 %v384
        %429 = vmatprep.subr.mxu0 0.0
        %430 = vmatpush1.msra.mxu0 0.0
        %431 = vmatprep.subr.mxu0 0.0
        %432 = vmatpush1.msra.mxu0 0.0
        %433 = vmatprep.subr.mxu0 0.0
        %434 = vmatpush1.msra.mxu0 0.0
        %435 = vmatprep.subr.mxu0 0.0
        %436 = vmatpush1.msra.mxu0 0.0
        %437 = vmatprep.subr.mxu0 0.0
        %438 = vmatpush1.msra.mxu0 0.0
        %439 = vmatprep.subr.mxu0 0.0
        %440 = vmatpush1.msra.mxu0 0.0
        %441 = vmatprep.subr.mxu0 0.0
        %442 = vmatpush1.msra.mxu0 0.0
        %443 = vmatprep.subr.mxu0 0.0
        %444 = vmatpush1.msra.mxu0 0.0
        %445 = vmatprep.subr.mxu0 0.0
        %446 = vmatpush1.msra.mxu0 0.0
        %447 = vmatprep.subr.mxu0 0.0
        %448 = vmatpush1.msra.mxu0 0.0
        %449 = vmatprep.subr.mxu0 0.0
        %450 = vmatpush1.msra.mxu0 0.0
        %451 = vmatprep.subr.mxu0 0.0
        %452 = vmatpush1.msra.mxu0 0.0
        %453 = vmatprep.subr.mxu0 0.0
        %454 = vmatpush1.msra.mxu0 0.0
        %455 = vmatprep.subr.mxu0 0.0
        %456 = vmatpush1.msra.mxu0 0.0
        %457 = vmatprep.subr.mxu0 0.0
        %458 = vmatpush1.msra.mxu0 0.0
        %459 = vmatprep.subr.mxu0 0.0
        %460 = vmatpush1.msra.mxu0 0.0
        %461 = vmatprep.subr.mxu0 0.0
        %462 = vmatpush1.msra.mxu0 0.0
        %463 = vmatprep.subr.mxu0 0.0
        %464 = vmatpush1.msra.mxu0 0.0
        %465 = vmatprep.subr.mxu0 0.0
        %466 = vmatpush1.msra.mxu0 0.0
        %467 = vmatprep.subr.mxu0 0.0
        %468 = vmatpush1.msra.mxu0 0.0
        %469 = vmatprep.subr.mxu0 0.0
        %470 = vmatpush1.msra.mxu0 0.0
        %471 = vmatprep.subr.mxu0 0.0
        %472 = vmatpush1.msra.mxu0 0.0
        %473 = vmatprep.subr.mxu0 0.0
        %474 = vmatpush1.msra.mxu0 0.0
        %475 = vmatprep.subr.mxu0 0.0
        %476 = vmatpush1.msra.mxu0 0.0
        %477 = vmatprep.subr.mxu0 0.0
        %478 = vmatpush1.msra.mxu0 0.0
        %479 = vmatprep.subr.mxu0 0.0
        %480 = vmatpush1.msra.mxu0 0.0
        %481 = vmatprep.subr.mxu0 0.0
        %482 = vmatpush1.msra.mxu0 0.0
        %483 = vmatprep.mubr.f32.mxu0 0.0
        %484 = vmatmul.mubr.f32.gmra.mrb[0].mxu0 %v380
        %v485 = vpop.f32.mrb[0].mxu0
        %v486 = vadd.f32 %v376, %v485
        %v487 = vpop.f32.mrb[0].mxu0
        %v488 = vadd.f32 %v376, %v487
        %489 = vdwg.mxu0
        %490 = vmatprep.subr.mxu0 %v315
        %491 = vmatpush1.msra.mxu0 %v314
        %492 = vmatprep.subr.mxu0 %v327
        %493 = vmatpush1.msra.mxu0 %v326
        %494 = vmatprep.subr.mxu0 %v339
        %495 = vmatpush1.msra.mxu0 %v338
        %496 = vmatprep.subr.mxu0 %v351
        %497 = vmatpush1.msra.mxu0 %v350
        %498 = vmatprep.subr.mxu0 %v393
        %499 = vmatpush1.msra.mxu0 %v390
        %500 = vmatprep.subr.mxu0 0.0
        %501 = vmatpush1.msra.mxu0 0.0
        %502 = vmatprep.subr.mxu0 0.0
        %503 = vmatpush1.msra.mxu0 0.0
        %504 = vmatprep.subr.mxu0 0.0
        %505 = vmatpush1.msra.mxu0 0.0
        %506 = vmatprep.subr.mxu0 0.0
        %507 = vmatpush1.msra.mxu0 0.0
        %508 = vmatprep.subr.mxu0 0.0
        %509 = vmatpush1.msra.mxu0 0.0
        %510 = vmatprep.subr.mxu0 0.0
        %511 = vmatpush1.msra.mxu0 0.0
        %512 = vmatprep.subr.mxu0 0.0
        %513 = vmatpush1.msra.mxu0 0.0
        %514 = vmatprep.subr.mxu0 0.0
        %515 = vmatpush1.msra.mxu0 0.0
        %516 = vmatprep.subr.mxu0 0.0
        %517 = vmatpush1.msra.mxu0 0.0
        %518 = vmatprep.subr.mxu0 0.0
        %519 = vmatpush1.msra.mxu0 0.0
        %520 = vmatprep.subr.mxu0 0.0
        %521 = vmatpush1.msra.mxu0 0.0
        %522 = vmatprep.subr.mxu0 0.0
        %523 = vmatpush1.msra.mxu0 0.0
        %524 = vmatprep.subr.mxu0 0.0
        %525 = vmatpush1.msra.mxu0 0.0
        %526 = vmatprep.subr.mxu0 0.0
        %527 = vmatpush1.msra.mxu0 0.0
        %528 = vmatprep.subr.mxu0 0.0
        %529 = vmatpush1.msra.mxu0 0.0
        %530 = vmatprep.subr.mxu0 0.0
        %531 = vmatpush1.msra.mxu0 0.0
        %532 = vmatprep.subr.mxu0 0.0
        %533 = vmatpush1.msra.mxu0 0.0
        %534 = vmatprep.subr.mxu0 0.0
        %535 = vmatpush1.msra.mxu0 0.0
        %536 = vmatprep.subr.mxu0 0.0
        %537 = vmatpush1.msra.mxu0 0.0
        %538 = vmatprep.subr.mxu0 0.0
        %539 = vmatpush1.msra.mxu0 0.0
        %540 = vmatprep.subr.mxu0 0.0
        %541 = vmatpush1.msra.mxu0 0.0
        %542 = vmatprep.subr.mxu0 0.0
        %543 = vmatpush1.msra.mxu0 0.0
        %544 = vmatprep.subr.mxu0 0.0
        %545 = vmatpush1.msra.mxu0 0.0
        %546 = vmatprep.subr.mxu0 0.0
        %547 = vmatpush1.msra.mxu0 0.0
        %548 = vmatprep.subr.mxu0 0.0
        %549 = vmatpush1.msra.mxu0 0.0
        %550 = vmatprep.subr.mxu0 0.0
        %551 = vmatpush1.msra.mxu0 0.0
        %552 = vmatprep.subr.mxu0 0.0
        %553 = vmatpush1.msra.mxu0 0.0
        %554 = vmatprep.mubr.f32.mxu0 0.0
        %555 = vmatmul.mubr.f32.gmra.mrb[0].mxu0 %v380
        %v556 = vpop.f32.mrb[0].mxu0
        %v557 = vadd.f32 %v376, %v556
        %v558 = vpop.f32.mrb[0].mxu0
        %v559 = vadd.f32 %v376, %v558
        %560 = vdwg.mxu0
        %561 = vmatprep.subr.mxu0 %v317
        %562 = vmatpush1.msra.mxu0 %v316
        %563 = vmatprep.subr.mxu0 %v329
        %564 = vmatpush1.msra.mxu0 %v328
        %565 = vmatprep.subr.mxu0 %v341
        %566 = vmatpush1.msra.mxu0 %v340
        %567 = vmatprep.subr.mxu0 %v353
        %568 = vmatpush1.msra.mxu0 %v352
        %569 = vmatprep.subr.mxu0 %v399
        %570 = vmatpush1.msra.mxu0 %v396
        %571 = vmatprep.subr.mxu0 0.0
        %572 = vmatpush1.msra.mxu0 0.0
        %573 = vmatprep.subr.mxu0 0.0
        %574 = vmatpush1.msra.mxu0 0.0
        %575 = vmatprep.subr.mxu0 0.0
        %576 = vmatpush1.msra.mxu0 0.0
        %577 = vmatprep.subr.mxu0 0.0
        %578 = vmatpush1.msra.mxu0 0.0
        %579 = vmatprep.subr.mxu0 0.0
        %580 = vmatpush1.msra.mxu0 0.0
        %581 = vmatprep.subr.mxu0 0.0
        %582 = vmatpush1.msra.mxu0 0.0
        %583 = vmatprep.subr.mxu0 0.0
        %584 = vmatpush1.msra.mxu0 0.0
        %585 = vmatprep.subr.mxu0 0.0
        %586 = vmatpush1.msra.mxu0 0.0
        %587 = vmatprep.subr.mxu0 0.0
        %588 = vmatpush1.msra.mxu0 0.0
        %589 = vmatprep.subr.mxu0 0.0
        %590 = vmatpush1.msra.mxu0 0.0
        %591 = vmatprep.subr.mxu0 0.0
        %592 = vmatpush1.msra.mxu0 0.0
        %593 = vmatprep.subr.mxu0 0.0
        %594 = vmatpush1.msra.mxu0 0.0
        %595 = vmatprep.subr.mxu0 0.0
        %596 = vmatpush1.msra.mxu0 0.0
        %597 = vmatprep.subr.mxu0 0.0
        %598 = vmatpush1.msra.mxu0 0.0
        %599 = vmatprep.subr.mxu0 0.0
        %600 = vmatpush1.msra.mxu0 0.0
        %601 = vmatprep.subr.mxu0 0.0
        %602 = vmatpush1.msra.mxu0 0.0
        %603 = vmatprep.subr.mxu0 0.0
        %604 = vmatpush1.msra.mxu0 0.0
        %605 = vmatprep.subr.mxu0 0.0
        %606 = vmatpush1.msra.mxu0 0.0
        %607 = vmatprep.subr.mxu0 0.0
        %608 = vmatpush1.msra.mxu0 0.0
        %609 = vmatprep.subr.mxu0 0.0
        %610 = vmatpush1.msra.mxu0 0.0
        %611 = vmatprep.subr.mxu0 0.0
        %612 = vmatpush1.msra.mxu0 0.0
        %613 = vmatprep.subr.mxu0 0.0
        %614 = vmatpush1.msra.mxu0 0.0
        %615 = vmatprep.subr.mxu0 0.0
        %616 = vmatpush1.msra.mxu0 0.0
        %617 = vmatprep.subr.mxu0 0.0
        %618 = vmatpush1.msra.mxu0 0.0
        %619 = vmatprep.subr.mxu0 0.0
        %620 = vmatpush1.msra.mxu0 0.0
        %621 = vmatprep.subr.mxu0 0.0
        %622 = vmatpush1.msra.mxu0 0.0
        %623 = vmatprep.subr.mxu0 0.0
        %624 = vmatpush1.msra.mxu0 0.0
        %625 = vmatprep.mubr.f32.mxu0 0.0
        %626 = vmatmul.mubr.f32.gmra.mrb[0].mxu0 %v380
        %v627 = vpop.f32.mrb[0].mxu0
        %v628 = vadd.f32 %v376, %v627
        %v629 = vpop.f32.mrb[0].mxu0
        %v630 = vadd.f32 %v376, %v629
        %631 = vdwg.mxu0
        %632 = vmatprep.subr.mxu0 %v319
        %633 = vmatpush1.msra.mxu0 %v318
        %634 = vmatprep.subr.mxu0 %v331
        %635 = vmatpush1.msra.mxu0 %v330
        %636 = vmatprep.subr.mxu0 %v343
        %637 = vmatpush1.msra.mxu0 %v342
        %638 = vmatprep.subr.mxu0 %v355
        %639 = vmatpush1.msra.mxu0 %v354
        %640 = vmatprep.subr.mxu0 %v405
        %641 = vmatpush1.msra.mxu0 %v402
        %642 = vmatprep.subr.mxu0 0.0
        %643 = vmatpush1.msra.mxu0 0.0
        %644 = vmatprep.subr.mxu0 0.0
        %645 = vmatpush1.msra.mxu0 0.0
        %646 = vmatprep.subr.mxu0 0.0
        %647 = vmatpush1.msra.mxu0 0.0
        %648 = vmatprep.subr.mxu0 0.0
        %649 = vmatpush1.msra.mxu0 0.0
        %650 = vmatprep.subr.mxu0 0.0
        %651 = vmatpush1.msra.mxu0 0.0
        %652 = vmatprep.subr.mxu0 0.0
        %653 = vmatpush1.msra.mxu0 0.0
        %654 = vmatprep.subr.mxu0 0.0
        %655 = vmatpush1.msra.mxu0 0.0
        %656 = vmatprep.subr.mxu0 0.0
        %657 = vmatpush1.msra.mxu0 0.0
        %658 = vmatprep.subr.mxu0 0.0
        %659 = vmatpush1.msra.mxu0 0.0
        %660 = vmatprep.subr.mxu0 0.0
        %661 = vmatpush1.msra.mxu0 0.0
        %662 = vmatprep.subr.mxu0 0.0
        %663 = vmatpush1.msra.mxu0 0.0
        %664 = vmatprep.subr.mxu0 0.0
        %665 = vmatpush1.msra.mxu0 0.0
        %666 = vmatprep.subr.mxu0 0.0
        %667 = vmatpush1.msra.mxu0 0.0
        %668 = vmatprep.subr.mxu0 0.0
        %669 = vmatpush1.msra.mxu0 0.0
        %670 = vmatprep.subr.mxu0 0.0
        %671 = vmatpush1.msra.mxu0 0.0
        %672 = vmatprep.subr.mxu0 0.0
        %673 = vmatpush1.msra.mxu0 0.0
        %674 = vmatprep.subr.mxu0 0.0
        %675 = vmatpush1.msra.mxu0 0.0
        %676 = vmatprep.subr.mxu0 0.0
        %677 = vmatpush1.msra.mxu0 0.0
        %678 = vmatprep.subr.mxu0 0.0
        %679 = vmatpush1.msra.mxu0 0.0
        %680 = vmatprep.subr.mxu0 0.0
        %681 = vmatpush1.msra.mxu0 0.0
        %682 = vmatprep.subr.mxu0 0.0
        %683 = vmatpush1.msra.mxu0 0.0
        %684 = vmatprep.subr.mxu0 0.0
        %685 = vmatpush1.msra.mxu0 0.0
        %686 = vmatprep.subr.mxu0 0.0
        %687 = vmatpush1.msra.mxu0 0.0
        %688 = vmatprep.subr.mxu0 0.0
        %689 = vmatpush1.msra.mxu0 0.0
        %690 = vmatprep.subr.mxu0 0.0
        %691 = vmatpush1.msra.mxu0 0.0
        %692 = vmatprep.subr.mxu0 0.0
        %693 = vmatpush1.msra.mxu0 0.0
        %694 = vmatprep.subr.mxu0 0.0
        %695 = vmatpush1.msra.mxu0 0.0
        %696 = vmatprep.mubr.f32.mxu0 0.0
        %697 = vmatmul.mubr.f32.gmra.mrb[0].mxu0 %v380
        %v698 = vpop.f32.mrb[0].mxu0
        %v699 = vadd.f32 %v376, %v698
        %v700 = vpop.f32.mrb[0].mxu0
        %v701 = vadd.f32 %v376, %v700
        %702 = vdwg.mxu0
        %703 = vmatprep.subr.mxu0 %v321
        %704 = vmatpush1.msra.mxu0 %v320
        %705 = vmatprep.subr.mxu0 %v333
        %706 = vmatpush1.msra.mxu0 %v332
        %707 = vmatprep.subr.mxu0 %v345
        %708 = vmatpush1.msra.mxu0 %v344
        %709 = vmatprep.subr.mxu0 %v357
        %710 = vmatpush1.msra.mxu0 %v356
        %711 = vmatprep.subr.mxu0 %v411
        %712 = vmatpush1.msra.mxu0 %v408
        %713 = vmatprep.subr.mxu0 0.0
        %714 = vmatpush1.msra.mxu0 0.0
        %715 = vmatprep.subr.mxu0 0.0
        %716 = vmatpush1.msra.mxu0 0.0
        %717 = vmatprep.subr.mxu0 0.0
        %718 = vmatpush1.msra.mxu0 0.0
        %719 = vmatprep.subr.mxu0 0.0
        %720 = vmatpush1.msra.mxu0 0.0
        %721 = vmatprep.subr.mxu0 0.0
        %722 = vmatpush1.msra.mxu0 0.0
        %723 = vmatprep.subr.mxu0 0.0
        %724 = vmatpush1.msra.mxu0 0.0
        %725 = vmatprep.subr.mxu0 0.0
        %726 = vmatpush1.msra.mxu0 0.0
        %727 = vmatprep.subr.mxu0 0.0
        %728 = vmatpush1.msra.mxu0 0.0
        %729 = vmatprep.subr.mxu0 0.0
        %730 = vmatpush1.msra.mxu0 0.0
        %731 = vmatprep.subr.mxu0 0.0
        %732 = vmatpush1.msra.mxu0 0.0
        %733 = vmatprep.subr.mxu0 0.0
        %734 = vmatpush1.msra.mxu0 0.0
        %735 = vmatprep.subr.mxu0 0.0
        %736 = vmatpush1.msra.mxu0 0.0
        %737 = vmatprep.subr.mxu0 0.0
        %738 = vmatpush1.msra.mxu0 0.0
        %739 = vmatprep.subr.mxu0 0.0
        %740 = vmatpush1.msra.mxu0 0.0
        %741 = vmatprep.subr.mxu0 0.0
        %742 = vmatpush1.msra.mxu0 0.0
        %743 = vmatprep.subr.mxu0 0.0
        %744 = vmatpush1.msra.mxu0 0.0
        %745 = vmatprep.subr.mxu0 0.0
        %746 = vmatpush1.msra.mxu0 0.0
        %747 = vmatprep.subr.mxu0 0.0
        %748 = vmatpush1.msra.mxu0 0.0
        %749 = vmatprep.subr.mxu0 0.0
        %750 = vmatpush1.msra.mxu0 0.0
        %751 = vmatprep.subr.mxu0 0.0
        %752 = vmatpush1.msra.mxu0 0.0
        %753 = vmatprep.subr.mxu0 0.0
        %754 = vmatpush1.msra.mxu0 0.0
        %755 = vmatprep.subr.mxu0 0.0
        %756 = vmatpush1.msra.mxu0 0.0
        %757 = vmatprep.subr.mxu0 0.0
        %758 = vmatpush1.msra.mxu0 0.0
        %759 = vmatprep.subr.mxu0 0.0
        %760 = vmatpush1.msra.mxu0 0.0
        %761 = vmatprep.subr.mxu0 0.0
        %762 = vmatpush1.msra.mxu0 0.0
        %763 = vmatprep.subr.mxu0 0.0
        %764 = vmatpush1.msra.mxu0 0.0
        %765 = vmatprep.subr.mxu0 0.0
        %766 = vmatpush1.msra.mxu0 0.0
        %767 = vmatprep.mubr.f32.mxu0 0.0
        %768 = vmatmul.mubr.f32.gmra.mrb[0].mxu0 %v380
        %v769 = vpop.f32.mrb[0].mxu0
        %v770 = vadd.f32 %v376, %v769
        %v771 = vpop.f32.mrb[0].mxu0
        %v772 = vadd.f32 %v376, %v771
        %773 = vdwg.mxu0
        %774 = vmatprep.subr.mxu0 %v323
        %775 = vmatpush1.msra.mxu0 %v322
        %776 = vmatprep.subr.mxu0 %v335
        %777 = vmatpush1.msra.mxu0 %v334
        %778 = vmatprep.subr.mxu0 %v347
        %779 = vmatpush1.msra.mxu0 %v346
        %780 = vmatprep.subr.mxu0 %v359
        %781 = vmatpush1.msra.mxu0 %v358
        %782 = vmatprep.subr.mxu0 %v417
        %783 = vmatpush1.msra.mxu0 %v414
        %784 = vmatprep.subr.mxu0 0.0
        %785 = vmatpush1.msra.mxu0 0.0
        %786 = vmatprep.subr.mxu0 0.0
        %787 = vmatpush1.msra.mxu0 0.0
        %788 = vmatprep.subr.mxu0 0.0
        %789 = vmatpush1.msra.mxu0 0.0
        %790 = vmatprep.subr.mxu0 0.0
        %791 = vmatpush1.msra.mxu0 0.0
        %792 = vmatprep.subr.mxu0 0.0
        %793 = vmatpush1.msra.mxu0 0.0
        %794 = vmatprep.subr.mxu0 0.0
        %795 = vmatpush1.msra.mxu0 0.0
        %796 = vmatprep.subr.mxu0 0.0
        %797 = vmatpush1.msra.mxu0 0.0
        %798 = vmatprep.subr.mxu0 0.0
        %799 = vmatpush1.msra.mxu0 0.0
        %800 = vmatprep.subr.mxu0 0.0
        %801 = vmatpush1.msra.mxu0 0.0
        %802 = vmatprep.subr.mxu0 0.0
        %803 = vmatpush1.msra.mxu0 0.0
        %804 = vmatprep.subr.mxu0 0.0
        %805 = vmatpush1.msra.mxu0 0.0
        %806 = vmatprep.subr.mxu0 0.0
        %807 = vmatpush1.msra.mxu0 0.0
        %808 = vmatprep.subr.mxu0 0.0
        %809 = vmatpush1.msra.mxu0 0.0
        %810 = vmatprep.subr.mxu0 0.0
        %811 = vmatpush1.msra.mxu0 0.0
        %812 = vmatprep.subr.mxu0 0.0
        %813 = vmatpush1.msra.mxu0 0.0
        %814 = vmatprep.subr.mxu0 0.0
        %815 = vmatpush1.msra.mxu0 0.0
        %816 = vmatprep.subr.mxu0 0.0
        %817 = vmatpush1.msra.mxu0 0.0
        %818 = vmatprep.subr.mxu0 0.0
        %819 = vmatpush1.msra.mxu0 0.0
        %820 = vmatprep.subr.mxu0 0.0
        %821 = vmatpush1.msra.mxu0 0.0
        %822 = vmatprep.subr.mxu0 0.0
        %823 = vmatpush1.msra.mxu0 0.0
        %824 = vmatprep.subr.mxu0 0.0
        %825 = vmatpush1.msra.mxu0 0.0
        %826 = vmatprep.subr.mxu0 0.0
        %827 = vmatpush1.msra.mxu0 0.0
        %828 = vmatprep.subr.mxu0 0.0
        %829 = vmatpush1.msra.mxu0 0.0
        %830 = vmatprep.subr.mxu0 0.0
        %831 = vmatpush1.msra.mxu0 0.0
        %832 = vmatprep.subr.mxu0 0.0
        %833 = vmatpush1.msra.mxu0 0.0
        %834 = vmatprep.subr.mxu0 0.0
        %835 = vmatpush1.msra.mxu0 0.0
        %836 = vmatprep.subr.mxu0 0.0
        %837 = vmatpush1.msra.mxu0 0.0
        %838 = vmatprep.mubr.f32.mxu0 0.0
        %839 = vmatmul.mubr.f32.gmra.mrb[0].mxu0 %v380
        %v840 = vpop.f32.mrb[0].mxu0
        %v841 = vadd.f32 %v376, %v840
        %v842 = vpop.f32.mrb[0].mxu0
        %v843 = vadd.f32 %v376, %v842
        %844 = vdwg.mxu0
        %v845 = vmax.f32 %v486, 0.0
        %v846 = vmax.f32 %v488, 0.0
        %v847 = vmax.f32 %v557, 0.0
        %v848 = vmax.f32 %v559, 0.0
        %v849 = vmax.f32 %v628, 0.0
        %v850 = vmax.f32 %v630, 0.0
        %v851 = vmax.f32 %v699, 0.0
        %v852 = vmax.f32 %v701, 0.0
        %v853 = vmax.f32 %v770, 0.0
        %v854 = vmax.f32 %v772, 0.0
        %v855 = vmax.f32 %v841, 0.0
        %v856 = vmax.f32 %v843, 0.0
        %857 = vst [vmem:[%s309] sm:$0xff] %v845
        %858 = vst [vmem:[%s309 + $0x8] sm:$0xff] %v846
        %859 = vst [vmem:[%s309 + $0x10] sm:$0xff] %v847
        %860 = vst [vmem:[%s309 + $0x18] sm:$0xff] %v848
        %861 = vst [vmem:[%s309 + $0x20] sm:$0xff] %v849
        %862 = vst [vmem:[%s309 + $0x28] sm:$0xff] %v850
        %863 = vst [vmem:[%s309 + $0x30] sm:$0xff] %v851
        %864 = vst [vmem:[%s309 + $0x38] sm:$0xff] %v852
        %865 = vst [vmem:[%s309 + $0x40] sm:$0xff] %v853
        %866 = vst [vmem:[%s309 + $0x48] sm:$0xff] %v854
        %867 = vst [vmem:[%s309 + $0x50] sm:$0xff] %v855
        %868 = vst [vmem:[%s309 + $0x58] sm:$0xff] %v856
        %s869 = smul.u32 12, %s14
        %p870 = scmp.lt.s32.totalorder %s869, 23
        %s871 = scalar_select %p870, %s869, 23
        %s872 = smul.addr %s871, 8
        %s873 = scalar_lea.vmem %s3, %s872
        // Predicated region
        $region56: #{multi_equi_operator_forward.1} parent=50 // pred_check
          %p874 = pneg %p100
        $region57: #{multi_equi_operator_forward.1} parent=50 // pred_check_branch
          %876 = sbr.rel (%p874) target = $region59
        $region58: #{multi_equi_operator_forward.1} parent=50 // pred_region
          %s877 = smul.u32 12, %s14
        $region59: #{multi_equi_operator_forward.1} parent=50 // pred_fallthru
          _
      $region51: #{multi_equi_operator_forward.1} parent=5 // pred_fallthru
        _
      %p878 = scmp.le.s32.totalorder 2, %s9
      // Predicated region
      $region60: #{multi_equi_operator_forward.1} parent=5 // pred_check
        %p879 = pneg %p878
      $region61: #{multi_equi_operator_forward.1} parent=5 // pred_check_branch
        %881 = sbr.rel (%p879) target = $region63
      $region62: #{multi_equi_operator_forward.1} parent=5 // pred_region
        %s882 = ssub.s32 %s9, 2
        // Predicated region
        $region64: #{multi_equi_operator_forward.1} parent=62 // pred_check
          %p883 = pneg %p106
        $region65: #{multi_equi_operator_forward.1} parent=62 // pred_check_branch
          %885 = sbr.rel (%p883) target = $region67
        $region66: #{multi_equi_operator_forward.1} parent=62 // pred_region
          %s886 = smul.u32 12, %s15
          %p887 = scmp.lt.s32.totalorder %s886, 23
          %s888 = scalar_select %p887, %s886, 23
          %s889 = smul.addr %s888, 8
          %s890 = scalar_lea.vmem %s3, %s889
        $region67: #{multi_equi_operator_forward.1} parent=62 // pred_fallthru
          _
      $region63: #{multi_equi_operator_forward.1} parent=5 // pred_fallthru
        _
    $region6: #{multi_equi_operator_forward.1} parent=1 // loop_footer
      %s13 = sadd.s32 1, %s9
    $region7: #{multi_equi_operator_forward.1} parent=1 // loop_footer_branch
      %8 = sbr.rel target = $region3
    $region8: #{multi_equi_operator_forward.1} parent=1 // loop_exit
      _

</llo_original>
